<compile_context>
chip_gen: v7x
topology: tpu7x:2x2x1
jax: 0.10.0
libtpu: 0.0.40
codegen_flags: <defaults>
</compile_context>

<pallas_src>
import functools

import jax
import jax.numpy as jnp
from jax.experimental import pallas as pl
from jax.experimental.pallas import tpu as pltpu

EPS = 1e-5
NEG_SLOPE = 0.2


def _round_up(x, m):
    return ((x + m - 1) // m) * m


def _stats_kernel(p_ref, w_ref, sum_ref, sumsq_ref):
    """Pass 1: conv tile on the MXU + per-channel sum / sum-of-squares accum."""
    i = pl.program_id(0)

    @pl.when(i == 0)
    def _init():
        sum_ref[...] = jnp.zeros_like(sum_ref)
        sumsq_ref[...] = jnp.zeros_like(sumsq_ref)

    conv = jnp.dot(p_ref[...], w_ref[...], preferred_element_type=jnp.float32)
    sum_ref[...] += jnp.sum(conv, axis=0, keepdims=True)
    sumsq_ref[...] += jnp.sum(conv * conv, axis=0, keepdims=True)


def _norm_kernel(p_ref, w_ref, scale_ref, shift_ref, o_ref):
    """Pass 2: recompute conv tile, fused BN affine + LeakyReLU(0.2)."""
    conv = jnp.dot(p_ref[...], w_ref[...], preferred_element_type=jnp.float32)
    y = conv * scale_ref[...] + shift_ref[...]
    o_ref[...] = jnp.where(y >= 0, y, NEG_SLOPE * y)


def _im2col_stride2_reflect(x):
    """x: (N, C, H, W) -> patches (N*Ho*Wo, C*9), columns ordered (c, kh, kw)."""
    n, c, h, w = x.shape
    xp = jnp.pad(x, ((0, 0), (0, 0), (1, 1), (1, 1)), mode="reflect")
    ho = (h + 2 - 3) // 2 + 1
    wo = (w + 2 - 3) // 2 + 1
    cols = []
    for kh in range(3):
        for kw in range(3):
            cols.append(xp[:, :, kh:kh + 2 * (ho - 1) + 1:2,
                              kw:kw + 2 * (wo - 1) + 1:2])        # (N, C, Ho, Wo)
    patches = jnp.stack(cols, axis=2)                              # (N, C, 9, Ho, Wo)
    patches = patches.transpose(0, 3, 4, 1, 2).reshape(n * ho * wo, c * 9)
    return patches, ho, wo


@functools.partial(jax.jit, static_argnames=("tile_m",))
def downsample(x, weight, gamma, beta, tile_m=512):
    """x: (N, C, H, W), weight: (C, C, 3, 3) OIHW, gamma/beta: (C,). Returns NCHW."""
    n, c, h, w = x.shape
    patches, ho, wo = _im2col_stride2_reflect(x)                   # (M, K) f32
    m, k = patches.shape
    cp = _round_up(c, 128)                                         # lane-dense C
    tm = min(tile_m, _round_up(m, 16))
    m_pad = _round_up(m, tm)

    # Zero row-padding contributes 0 to sum/sumsq (mean/var use the true M).
    patches = jnp.pad(patches, ((0, m_pad - m), (0, 0))).astype(jnp.bfloat16)
    w_mat = jnp.pad(weight.reshape(c, c * 9).astype(jnp.float32),
                    ((0, cp - c), (0, 0))).T.astype(jnp.bfloat16)  # (K, Cp)

    grid = (m_pad // tm,)
    flops = 2 * m_pad * k * cp

    # ---- Pass 1: per-channel sum and sum-of-squares of the conv output ----
    conv_sum, conv_sumsq = pl.pallas_call(
        _stats_kernel,
        grid=grid,
        out_shape=(jax.ShapeDtypeStruct((1, cp), jnp.float32),
                   jax.ShapeDtypeStruct((1, cp), jnp.float32)),
        in_specs=[pl.BlockSpec((tm, k), lambda i: (i, 0)),
                  pl.BlockSpec((k, cp), lambda i: (0, 0))],
        out_specs=(pl.BlockSpec((1, cp), lambda i: (0, 0)),
                   pl.BlockSpec((1, cp), lambda i: (0, 0))),
        compiler_params=pltpu.CompilerParams(
            dimension_semantics=("arbitrary",)),
        cost_estimate=pl.CostEstimate(
            flops=flops, transcendentals=0,
            bytes_accessed=m_pad * k * 2 + k * cp * 2 + 2 * cp * 4),
    )(patches, w_mat)

    # Fold BN (training-mode biased batch stats) + affine into per-channel
    # scale/shift in f32 (tiny, done in plain JAX).
    inv_m = jnp.float32(1.0 / m)
    mean = conv_sum[0] * inv_m                                     # (Cp,)
    var = jnp.maximum(conv_sumsq[0] * inv_m - mean * mean, 0.0)
    inv_std = jax.lax.rsqrt(var + EPS)
    gamma_p = jnp.pad(gamma.astype(jnp.float32), (0, cp - c))
    beta_p = jnp.pad(beta.astype(jnp.float32), (0, cp - c))
    scale = (gamma_p * inv_std).reshape(1, cp)
    shift = (beta_p - mean * gamma_p * inv_std).reshape(1, cp)

    # ---- Pass 2: recompute conv tiles + normalize + LeakyReLU --------------
    out = pl.pallas_call(
        _norm_kernel,
        grid=grid,
        out_shape=jax.ShapeDtypeStruct((m_pad, cp), jnp.float32),
        in_specs=[pl.BlockSpec((tm, k), lambda i: (i, 0)),
                  pl.BlockSpec((k, cp), lambda i: (0, 0)),
                  pl.BlockSpec((1, cp), lambda i: (0, 0)),
                  pl.BlockSpec((1, cp), lambda i: (0, 0))],
        out_specs=pl.BlockSpec((tm, cp), lambda i: (i, 0)),
        compiler_params=pltpu.CompilerParams(
            dimension_semantics=("parallel",)),
        cost_estimate=pl.CostEstimate(
            flops=flops, transcendentals=0,
            bytes_accessed=(m_pad * k * 2 + k * cp * 2 + 2 * cp * 4
                            + m_pad * cp * 4)),
    )(patches, w_mat, scale, shift)

    # Drop M/C padding and return NCHW to match the PyTorch module.
    return out[:m, :c].reshape(n, ho, wo, c).transpose(0, 3, 1, 2)


def _reference(x, weight, gamma, beta):
    """Pure-JAX f32 reference (conv via lax, BN training-mode, leaky relu)."""
    xp = jnp.pad(x, ((0, 0), (0, 0), (1, 1), (1, 1)), mode="reflect")
    conv = jax.lax.conv_general_dilated(
        xp.astype(jnp.float32), weight.astype(jnp.float32),
        window_strides=(2, 2), padding="VALID",
        dimension_numbers=("NCHW", "OIHW", "NCHW"))
    mean = conv.mean(axis=(0, 2, 3), keepdims=True)
    var = ((conv - mean) ** 2).mean(axis=(0, 2, 3), keepdims=True)
    xhat = (conv - mean) * jax.lax.rsqrt(var + EPS)
    y = gamma.reshape(1, -1, 1, 1) * xhat + beta.reshape(1, -1, 1, 1)
    return jnp.where(y >= 0, y, NEG_SLOPE * y)


if __name__ == "__main__":
    key = jax.random.PRNGKey(0)
    kx, kw = jax.random.split(key)

    N, C, H, W = 2, 4, 16, 16
    x = jax.random.normal(kx, (N, C, H, W), dtype=jnp.float32)
    # Conv2d weight (out_ch, in_ch, 3, 3), no bias.
    weight = jax.random.normal(kw, (C, C, 3, 3), dtype=jnp.float32) * 0.1
    # BatchNorm2d default affine init: gamma=1, beta=0.
    gamma = jnp.ones((C,), dtype=jnp.float32)
    beta = jnp.zeros((C,), dtype=jnp.float32)

    out = jax.block_until_ready(downsample(x, weight, gamma, beta))
    ref = jax.block_until_ready(_reference(x, weight, gamma, beta))

    assert out.shape == (N, C, H // 2, W // 2), out.shape
    # Tolerance accounts for bf16 quantization of the MXU inputs (f32 accum).
    assert jnp.allclose(out, ref, atol=5e-2, rtol=5e-2), float(
        jnp.max(jnp.abs(out - ref)))

    print("KERNEL_OK")
</pallas_src>

<mosaic_0001>
module attributes {stable_mosaic.version = 11 : i64} {
  func.func @_stats_kernel(%arg0: i32, %arg1: memref<128x36xbf16, #tpu.memory_space<vmem>>, %arg2: memref<36x128xbf16, #tpu.memory_space<vmem>>, %arg3: memref<1x128xf32, #tpu.memory_space<vmem>>, %arg4: memref<1x128xf32, #tpu.memory_space<vmem>>) attributes {dimension_semantics = [#tpu.dimension_semantics<arbitrary>], iteration_bounds = array<i64: 1>, scalar_prefetch = 0 : i64, scratch_operands = 0 : i64, tpu.core_type = #tpu.core_type<tc>, window_params = [{transform_indices = @transform_0, window_bounds = array<i64: 128, 36>}, {pipeline_mode = #tpu.pipeline_mode<synchronous>, transform_indices = @transform_1, window_bounds = array<i64: 36, 128>}, {pipeline_mode = #tpu.pipeline_mode<synchronous>, transform_indices = @transform_2, window_bounds = array<i64: 1, 128>}, {pipeline_mode = #tpu.pipeline_mode<synchronous>, transform_indices = @transform_3, window_bounds = array<i64: 1, 128>}]} {
    %c0_i32 = arith.constant 0 : i32
    %0 = arith.cmpi eq, %arg0, %c0_i32 : i32
    %1 = arith.extui %0 : i1 to i32
    %c0_i32_0 = arith.constant 0 : i32
    %2 = arith.cmpi ne, %1, %c0_i32_0 : i32
    scf.if %2 {
      %cst_14 = arith.constant 0.000000e+00 : f32
      %17 = vector.broadcast %cst_14 : f32 to vector<1x128xf32>
      %c0_15 = arith.constant 0 : index
      %c0_16 = arith.constant 0 : index
      %18 = vector.load %arg3[%c0_15, %c0_16] : memref<1x128xf32, #tpu.memory_space<vmem>>, vector<1x128xf32>
      tpu.vector_store %arg3[%c0_15, %c0_16], %17 {strides = array<i32>} : memref<1x128xf32, #tpu.memory_space<vmem>>, vector<1x128xf32>,
      %cst_17 = arith.constant 0.000000e+00 : f32
      %19 = vector.broadcast %cst_17 : f32 to vector<1x128xf32>
      %c0_18 = arith.constant 0 : index
      %c0_19 = arith.constant 0 : index
      %20 = vector.load %arg4[%c0_18, %c0_19] : memref<1x128xf32, #tpu.memory_space<vmem>>, vector<1x128xf32>
      tpu.vector_store %arg4[%c0_18, %c0_19], %19 {strides = array<i32>} : memref<1x128xf32, #tpu.memory_space<vmem>>, vector<1x128xf32>,
    } else {
    }
    %c0 = arith.constant 0 : index
    %c0_1 = arith.constant 0 : index
    %3 = vector.load %arg1[%c0, %c0_1] : memref<128x36xbf16, #tpu.memory_space<vmem>>, vector<128x36xbf16>
    %c0_2 = arith.constant 0 : index
    %c0_3 = arith.constant 0 : index
    %4 = vector.load %arg2[%c0_2, %c0_3] : memref<36x128xbf16, #tpu.memory_space<vmem>>, vector<36x128xbf16>
    %cst = arith.constant dense<0.000000e+00> : vector<128x128xf32>
    %5 = tpu.matmul %3, %4, %cst {dimension_numbers = #tpu.dot_dimension_numbers<[1], [0], [0], [1], [0, 0, 1, 1], [], []>} : vector<128x36xbf16>, vector<36x128xbf16>, vector<128x128xf32> -> vector<128x128xf32>
    %c0_4 = arith.constant 0 : index
    %c0_5 = arith.constant 0 : index
    %6 = vector.load %arg3[%c0_4, %c0_5] : memref<1x128xf32, #tpu.memory_space<vmem>>, vector<1x128xf32>
    %cst_6 = arith.constant dense<0.000000e+00> : vector<128xf32>
    %7 = vector.multi_reduction <add>, %5, %cst_6 [0] : vector<128x128xf32> to vector<128xf32>
    %8 = vector.shape_cast %7 : vector<128xf32> to vector<1x128xf32>
    %9 = arith.addf %6, %8 : vector<1x128xf32>
    %c0_7 = arith.constant 0 : index
    %c0_8 = arith.constant 0 : index
    %10 = vector.load %arg3[%c0_7, %c0_8] : memref<1x128xf32, #tpu.memory_space<vmem>>, vector<1x128xf32>
    tpu.vector_store %arg3[%c0_7, %c0_8], %9 {strides = array<i32>} : memref<1x128xf32, #tpu.memory_space<vmem>>, vector<1x128xf32>,
    %c0_9 = arith.constant 0 : index
    %c0_10 = arith.constant 0 : index
    %11 = vector.load %arg4[%c0_9, %c0_10] : memref<1x128xf32, #tpu.memory_space<vmem>>, vector<1x128xf32>
    %12 = arith.mulf %5, %5 : vector<128x128xf32>
    %cst_11 = arith.constant dense<0.000000e+00> : vector<128xf32>
    %13 = vector.multi_reduction <add>, %12, %cst_11 [0] : vector<128x128xf32> to vector<128xf32>
    %14 = vector.shape_cast %13 : vector<128xf32> to vector<1x128xf32>
    %15 = arith.addf %11, %14 : vector<1x128xf32>
    %c0_12 = arith.constant 0 : index
    %c0_13 = arith.constant 0 : index
    %16 = vector.load %arg4[%c0_12, %c0_13] : memref<1x128xf32, #tpu.memory_space<vmem>>, vector<1x128xf32>
    tpu.vector_store %arg4[%c0_12, %c0_13], %15 {strides = array<i32>} : memref<1x128xf32, #tpu.memory_space<vmem>>, vector<1x128xf32>,
    return
  }
  func.func @transform_0(%arg0: i32) -> (i32, i32) {
    %c0_i32 = arith.constant 0 : i32
    %c0_i32_0 = arith.constant 0 : i32
    return %arg0, %c0_i32 : i32, i32
  }
  func.func @transform_1(%arg0: i32) -> (i32, i32) {
    %c0_i32 = arith.constant 0 : i32
    %c0_i32_0 = arith.constant 0 : i32
    %c0_i32_1 = arith.constant 0 : i32
    return %c0_i32, %c0_i32_0 : i32, i32
  }
  func.func @transform_2(%arg0: i32) -> (i32, i32) {
    %c0_i32 = arith.constant 0 : i32
    %c0_i32_0 = arith.constant 0 : i32
    %c0_i32_1 = arith.constant 0 : i32
    return %c0_i32, %c0_i32_0 : i32, i32
  }
  func.func @transform_3(%arg0: i32) -> (i32, i32) {
    %c0_i32 = arith.constant 0 : i32
    %c0_i32_0 = arith.constant 0 : i32
    %c0_i32_1 = arith.constant 0 : i32
    return %c0_i32, %c0_i32_0 : i32, i32
  }
}

module attributes {stable_mosaic.version = 11 : i64} {
  func.func @_norm_kernel(%arg0: i32, %arg1: memref<128x36xbf16, #tpu.memory_space<vmem>>, %arg2: memref<36x128xbf16, #tpu.memory_space<vmem>>, %arg3: memref<1x128xf32, #tpu.memory_space<vmem>>, %arg4: memref<1x128xf32, #tpu.memory_space<vmem>>, %arg5: memref<128x128xf32, #tpu.memory_space<vmem>>) attributes {dimension_semantics = [#tpu.dimension_semantics<parallel>], iteration_bounds = array<i64: 1>, scalar_prefetch = 0 : i64, scratch_operands = 0 : i64, tpu.core_type = #tpu.core_type<tc>, window_params = [{transform_indices = @transform_0, window_bounds = array<i64: 128, 36>}, {pipeline_mode = #tpu.pipeline_mode<synchronous>, transform_indices = @transform_1, window_bounds = array<i64: 36, 128>}, {pipeline_mode = #tpu.pipeline_mode<synchronous>, transform_indices = @transform_2, window_bounds = array<i64: 1, 128>}, {pipeline_mode = #tpu.pipeline_mode<synchronous>, transform_indices = @transform_3, window_bounds = array<i64: 1, 128>}, {transform_indices = @transform_4, window_bounds = array<i64: 128, 128>}]} {
    %c0 = arith.constant 0 : index
    %c0_0 = arith.constant 0 : index
    %0 = vector.load %arg1[%c0, %c0_0] : memref<128x36xbf16, #tpu.memory_space<vmem>>, vector<128x36xbf16>
    %c0_1 = arith.constant 0 : index
    %c0_2 = arith.constant 0 : index
    %1 = vector.load %arg2[%c0_1, %c0_2] : memref<36x128xbf16, #tpu.memory_space<vmem>>, vector<36x128xbf16>
    %cst = arith.constant dense<0.000000e+00> : vector<128x128xf32>
    %2 = tpu.matmul %0, %1, %cst {dimension_numbers = #tpu.dot_dimension_numbers<[1], [0], [0], [1], [0, 0, 1, 1], [], []>} : vector<128x36xbf16>, vector<36x128xbf16>, vector<128x128xf32> -> vector<128x128xf32>
    %c0_3 = arith.constant 0 : index
    %c0_4 = arith.constant 0 : index
    %3 = vector.load %arg3[%c0_3, %c0_4] : memref<1x128xf32, #tpu.memory_space<vmem>>, vector<1x128xf32>
    %4 = vector.broadcast %3 : vector<1x128xf32> to vector<128x128xf32>
    %5 = arith.mulf %2, %4 : vector<128x128xf32>
    %c0_5 = arith.constant 0 : index
    %c0_6 = arith.constant 0 : index
    %6 = vector.load %arg4[%c0_5, %c0_6] : memref<1x128xf32, #tpu.memory_space<vmem>>, vector<1x128xf32>
    %7 = vector.broadcast %6 : vector<1x128xf32> to vector<128x128xf32>
    %8 = arith.addf %5, %7 : vector<128x128xf32>
    %cst_7 = arith.constant 0.000000e+00 : f32
    %9 = vector.broadcast %cst_7 : f32 to vector<128x128xf32>
    %10 = arith.cmpf oge, %8, %9 : vector<128x128xf32>
    %cst_8 = arith.constant 2.000000e-01 : f32
    %11 = vector.broadcast %cst_8 : f32 to vector<128x128xf32>
    %12 = arith.mulf %11, %8 : vector<128x128xf32>
    %13 = arith.select %10, %8, %12 : vector<128x128xi1>, vector<128x128xf32>
    %c0_9 = arith.constant 0 : index
    %c0_10 = arith.constant 0 : index
    %14 = vector.load %arg5[%c0_9, %c0_10] : memref<128x128xf32, #tpu.memory_space<vmem>>, vector<128x128xf32>
    tpu.vector_store %arg5[%c0_9, %c0_10], %13 {strides = array<i32>} : memref<128x128xf32, #tpu.memory_space<vmem>>, vector<128x128xf32>,
    return
  }
  func.func @transform_0(%arg0: i32) -> (i32, i32) {
    %c0_i32 = arith.constant 0 : i32
    %c0_i32_0 = arith.constant 0 : i32
    return %arg0, %c0_i32 : i32, i32
  }
  func.func @transform_1(%arg0: i32) -> (i32, i32) {
    %c0_i32 = arith.constant 0 : i32
    %c0_i32_0 = arith.constant 0 : i32
    %c0_i32_1 = arith.constant 0 : i32
    return %c0_i32, %c0_i32_0 : i32, i32
  }
  func.func @transform_2(%arg0: i32) -> (i32, i32) {
    %c0_i32 = arith.constant 0 : i32
    %c0_i32_0 = arith.constant 0 : i32
    %c0_i32_1 = arith.constant 0 : i32
    return %c0_i32, %c0_i32_0 : i32, i32
  }
  func.func @transform_3(%arg0: i32) -> (i32, i32) {
    %c0_i32 = arith.constant 0 : i32
    %c0_i32_0 = arith.constant 0 : i32
    %c0_i32_1 = arith.constant 0 : i32
    return %c0_i32, %c0_i32_0 : i32, i32
  }
  func.func @transform_4(%arg0: i32) -> (i32, i32) {
    %c0_i32 = arith.constant 0 : i32
    %c0_i32_0 = arith.constant 0 : i32
    return %arg0, %c0_i32 : i32, i32
  }
}

</mosaic_0001>

<llo_original>
// kernel: downsample.3
$region0: #{downsample.3}
  #allocation0 [shape = 'u32[]', space=smem, size = 0x4, offset = 0x4, fixed_abs, tag = 'smem constant byte address 0x4 - core index']
  #allocation1 [shape = 'u32[144,128]{1,0:T(1,128)}', space=vmem, size = 0x12000, scoped, tag = 'internal scratch']
  %s0 = inlined_call_operand.vmem [shape: bf16[128,36], index: 0, kind: input, shape index: {}]
  %s1 = inlined_call_operand.vmem [shape: bf16[36,128], index: 1, kind: input, shape index: {}]
  %s2 = inlined_call_operand.vmem [shape: f32[1,128], index: 2, kind: input, shape index: {}]
  %s3 = inlined_call_operand.vmem [shape: f32[1,128], index: 3, kind: input, shape index: {}]
  %s4 = inlined_call_operand.vmem [shape: f32[128,128], index: 4, kind: output, shape index: {}]
  %s5 = sld [smem:[#allocation0]]
  $region26: #{downsample.3} parent=0
    _
  %s7 = ssub.s32 1, %s5
  %s8 = scalar_select 0, %s7, %s5
  // Predicated region
  $region2: #{downsample.3} parent=0 // pred_check
    _
  $region3: #{downsample.3} parent=0 // pred_check_branch
    %10 = sbr.rel (0) target = $region5
  $region4: #{downsample.3} parent=0 // pred_region
    _
  $region5: #{downsample.3} parent=0 // pred_fallthru
    _
  // Predicated region
  $region6: #{downsample.3} parent=0 // pred_check
    _
  $region7: #{downsample.3} parent=0 // pred_check_branch
    %12 = sbr.rel (0) target = $region9
  $region8: #{downsample.3} parent=0 // pred_region
    _
  $region9: #{downsample.3} parent=0 // pred_fallthru
    _
  // Predicated region
  $region10: #{downsample.3} parent=0 // pred_check
    _
  $region11: #{downsample.3} parent=0 // pred_check_branch
    %14 = sbr.rel (0) target = $region13
  $region12: #{downsample.3} parent=0 // pred_region
    _
  $region13: #{downsample.3} parent=0 // pred_fallthru
    _
  // Predicated region
  $region14: #{downsample.3} parent=0 // pred_check
    _
  $region15: #{downsample.3} parent=0 // pred_check_branch
    %16 = sbr.rel (0) target = $region17
  $region16: #{downsample.3} parent=0 // pred_region
    _
  $region17: #{downsample.3} parent=0 // pred_fallthru
    _
  %v18 = vld [vmem:[%s0] sm:$0xf]
  %v19 = vld [vmem:[%s0 + $0x4] sm:$0xf]
  %v20 = vld [vmem:[%s0 + $0x8] sm:$0xf]
  %v21 = vld [vmem:[%s0 + $0xc] sm:$0xf]
  %v22 = vld [vmem:[%s0 + $0x10] sm:$0xf]
  %v23 = vld [vmem:[%s0 + $0x14] sm:$0xf]
  %v24 = vld [vmem:[%s0 + $0x18] sm:$0xf]
  %v25 = vld [vmem:[%s0 + $0x1c] sm:$0xf]
  %v26 = vld [vmem:[%s0 + $0x20] sm:$0xf]
  %v27 = vld [vmem:[%s0 + $0x24] sm:$0xf]
  %v28 = vld [vmem:[%s0 + $0x28] sm:$0xf]
  %v29 = vld [vmem:[%s0 + $0x2c] sm:$0xf]
  %v30 = vld [vmem:[%s0 + $0x30] sm:$0xf]
  %v31 = vld [vmem:[%s0 + $0x34] sm:$0xf]
  %v32 = vld [vmem:[%s0 + $0x38] sm:$0xf]
  %v33 = vld [vmem:[%s0 + $0x3c] sm:$0xf]
  %v34 = vld [vmem:[%s1] sm:$0xf]
  %v35 = vld [vmem:[%s1 + $0x4] sm:$0xf]
  %v36 = vld [vmem:[%s1 + $0x8] sm:$0xf]
  %v37 = vld [vmem:[%s1 + $0xc] sm:$0xf]
  %v38 = vld [vmem:[%s1 + $0x10] sm:$0x3]
  %v55 = vunpack.c.l.b16 %v18
  %v56 = vunpack.c.l.b16 %v19
  %v57 = vunpack.c.l.b16 %v20
  %v58 = vunpack.c.l.b16 %v21
  %v59 = vunpack.c.l.b16 %v22
  %v60 = vunpack.c.l.b16 %v23
  %v61 = vunpack.c.l.b16 %v24
  %v62 = vunpack.c.l.b16 %v25
  %v63 = vunpack.c.l.b16 %v26
  %v64 = vunpack.c.l.b16 %v27
  %v65 = vunpack.c.l.b16 %v28
  %v66 = vunpack.c.l.b16 %v29
  %v67 = vunpack.c.l.b16 %v30
  %v68 = vunpack.c.l.b16 %v31
  %v69 = vunpack.c.l.b16 %v32
  %v70 = vunpack.c.l.b16 %v33
  %v71 = vpack.c.b16 %v56, %v55
  %v72 = vpack.c.b16 %v58, %v57
  %v73 = vpack.c.b16 %v60, %v59
  %v74 = vpack.c.b16 %v62, %v61
  %v75 = vpack.c.b16 %v64, %v63
  %v76 = vpack.c.b16 %v66, %v65
  %v77 = vpack.c.b16 %v68, %v67
  %v78 = vpack.c.b16 %v70, %v69
  %v84 = vunpack.c.l.b16 %v34
  %v85 = vunpack.c.l.b16 %v35
  %v86 = vunpack.c.l.b16 %v36
  %v87 = vunpack.c.l.b16 %v37
  %v88 = vunpack.c.l.b16 %v38
  %v89 = vpack.c.b16 %v85, %v84
  %v90 = vpack.c.b16 %v87, %v86
  %v91 = vpack.c.b16 %v88, %v88
  %vm94 = vcmask 293888
  %v96 = vsel %vm94, %v71, 0
  %v99 = vsel %vm94, %v72, 0
  %v102 = vsel %vm94, %v73, 0
  %v105 = vsel %vm94, %v74, 0
  %v108 = vsel %vm94, %v75, 0
  %v111 = vsel %vm94, %v76, 0
  %v114 = vsel %vm94, %v77, 0
  %v117 = vsel %vm94, %v78, 0
  %vm119 = vcmask 1041408
  %v121 = vsel %vm119, %v91, 0
  %123 = vmatprep.subr.bf16.mxu0 0
  %124 = vmatpush1.bf16.msra.mxu0 %v89
  %125 = vmatprep.subr.bf16.mxu0 0
  %126 = vmatpush1.bf16.msra.mxu0 %v90
  %127 = vmatprep.subr.bf16.mxu0 0
  %128 = vmatpush1.bf16.msra.mxu0 %v121
  %129 = vmatprep.subr.bf16.mxu0 0
  %130 = vmatpush1.bf16.msra.mxu0 0
  %131 = vmatprep.subr.bf16.mxu0 0
  %132 = vmatpush1.bf16.msra.mxu0 0
  %133 = vmatprep.subr.bf16.mxu0 0
  %134 = vmatpush1.bf16.msra.mxu0 0
  %135 = vmatprep.subr.bf16.mxu0 0
  %136 = vmatpush1.bf16.msra.mxu0 0
  %137 = vmatprep.subr.bf16.mxu0 0
  %138 = vmatpush1.bf16.msra.mxu0 0
  %139 = vmatprep.subr.bf16.mxu0 0
  %140 = vmatpush1.bf16.msra.mxu0 0
  %141 = vmatprep.subr.bf16.mxu0 0
  %142 = vmatpush1.bf16.msra.mxu0 0
  %143 = vmatprep.subr.bf16.mxu0 0
  %144 = vmatpush1.bf16.msra.mxu0 0
  %145 = vmatprep.subr.bf16.mxu0 0
  %146 = vmatpush1.bf16.msra.mxu0 0
  %147 = vmatprep.subr.bf16.mxu0 0
  %148 = vmatpush1.bf16.msra.mxu0 0
  %149 = vmatprep.subr.bf16.mxu0 0
  %150 = vmatpush1.bf16.msra.mxu0 0
  %151 = vmatprep.subr.bf16.mxu0 0
  %152 = vmatpush1.bf16.msra.mxu0 0
  %153 = vmatprep.subr.bf16.mxu0 0
  %154 = vmatpush1.bf16.msra.mxu0 0
  %155 = vmatprep.mubr.bf16.mxu0 0
  %156 = vmatmul.mubr.bf16.gmra.mrb[0].mxu0 %v96
  %v157 = vpop.f32.mrb[0].mxu0
  %v158 = vadd.f32 0.0, %v157
  %v159 = vpop.f32.mrb[0].mxu0
  %v160 = vpop.f32.mrb[0].mxu0
  %v161 = vadd.f32 0.0, %v160
  %v162 = vpop.f32.mrb[0].mxu0
  %163 = vmatprep.mubr.bf16.mxu0 0
  %164 = vmatmul.mubr.bf16.gmra.mrb[0].mxu0 %v99
  %v165 = vpop.f32.mrb[0].mxu0
  %v166 = vadd.f32 0.0, %v165
  %v167 = vpop.f32.mrb[0].mxu0
  %v168 = vpop.f32.mrb[0].mxu0
  %v169 = vadd.f32 0.0, %v168
  %v170 = vpop.f32.mrb[0].mxu0
  %171 = vmatprep.mubr.bf16.mxu0 0
  %172 = vmatmul.mubr.bf16.gmra.mrb[0].mxu0 %v102
  %v173 = vpop.f32.mrb[0].mxu0
  %v174 = vadd.f32 0.0, %v173
  %v175 = vpop.f32.mrb[0].mxu0
  %v176 = vpop.f32.mrb[0].mxu0
  %v177 = vadd.f32 0.0, %v176
  %v178 = vpop.f32.mrb[0].mxu0
  %179 = vmatprep.mubr.bf16.mxu0 0
  %180 = vmatmul.mubr.bf16.gmra.mrb[0].mxu0 %v105
  %v181 = vpop.f32.mrb[0].mxu0
  %v182 = vadd.f32 0.0, %v181
  %v183 = vpop.f32.mrb[0].mxu0
  %v184 = vpop.f32.mrb[0].mxu0
  %v185 = vadd.f32 0.0, %v184
  %v186 = vpop.f32.mrb[0].mxu0
  %187 = vmatprep.mubr.bf16.mxu0 0
  %188 = vmatmul.mubr.bf16.gmra.mrb[0].mxu0 %v108
  %v189 = vpop.f32.mrb[0].mxu0
  %v190 = vadd.f32 0.0, %v189
  %v191 = vpop.f32.mrb[0].mxu0
  %v192 = vpop.f32.mrb[0].mxu0
  %v193 = vadd.f32 0.0, %v192
  %v194 = vpop.f32.mrb[0].mxu0
  %195 = vmatprep.mubr.bf16.mxu0 0
  %196 = vmatmul.mubr.bf16.gmra.mrb[0].mxu0 %v111
  %v197 = vpop.f32.mrb[0].mxu0
  %v198 = vadd.f32 0.0, %v197
  %v199 = vpop.f32.mrb[0].mxu0
  %v200 = vpop.f32.mrb[0].mxu0
  %v201 = vadd.f32 0.0, %v200
  %v202 = vpop.f32.mrb[0].mxu0
  %203 = vmatprep.mubr.bf16.mxu0 0
  %204 = vmatmul.mubr.bf16.gmra.mrb[0].mxu0 %v114
  %v205 = vpop.f32.mrb[0].mxu0
  %v206 = vadd.f32 0.0, %v205
  %v207 = vpop.f32.mrb[0].mxu0
  %v208 = vpop.f32.mrb[0].mxu0
  %v209 = vadd.f32 0.0, %v208
  %v210 = vpop.f32.mrb[0].mxu0
  %211 = vmatprep.mubr.bf16.mxu0 0
  %212 = vmatmul.mubr.bf16.gmra.mrb[0].mxu0 %v117
  %v213 = vpop.f32.mrb[0].mxu0
  %v214 = vadd.f32 0.0, %v213
  %v215 = vpop.f32.mrb[0].mxu0
  %v216 = vpop.f32.mrb[0].mxu0
  %v217 = vadd.f32 0.0, %v216
  %v218 = vpop.f32.mrb[0].mxu0
  %219 = vdwg.mxu0
  %v220 = vld [vmem:[%s2] sm:$0x1]
  %v222 = vlaneseq
  %v223 = vshrl.u32 %v222, 7
  %v224 = vsub.s32 0, %v223
  %v225 = vrot.slane %v220, %v224
  %v227 = vmul.f32 %v158, %v225
  %v228 = vmul.f32 %v161, %v225
  %v229 = vmul.f32 %v166, %v225
  %v230 = vmul.f32 %v169, %v225
  %v231 = vmul.f32 %v174, %v225
  %v232 = vmul.f32 %v177, %v225
  %v233 = vmul.f32 %v182, %v225
  %v234 = vmul.f32 %v185, %v225
  %v235 = vmul.f32 %v190, %v225
  %v236 = vmul.f32 %v193, %v225
  %v237 = vmul.f32 %v198, %v225
  %v238 = vmul.f32 %v201, %v225
  %v239 = vmul.f32 %v206, %v225
  %v240 = vmul.f32 %v209, %v225
  %v241 = vmul.f32 %v214, %v225
  %v242 = vmul.f32 %v217, %v225
  %v243 = vld [vmem:[%s3] sm:$0x1]
  %v245 = vlaneseq
  %v246 = vshrl.u32 %v245, 7
  %v247 = vsub.s32 0, %v246
  %v248 = vrot.slane %v243, %v247
  %v250 = vadd.f32 %v227, %v248
  %v251 = vadd.f32 %v228, %v248
  %v252 = vadd.f32 %v229, %v248
  %v253 = vadd.f32 %v230, %v248
  %v254 = vadd.f32 %v231, %v248
  %v255 = vadd.f32 %v232, %v248
  %v256 = vadd.f32 %v233, %v248
  %v257 = vadd.f32 %v234, %v248
  %v258 = vadd.f32 %v235, %v248
  %v259 = vadd.f32 %v236, %v248
  %v260 = vadd.f32 %v237, %v248
  %v261 = vadd.f32 %v238, %v248
  %v262 = vadd.f32 %v239, %v248
  %v263 = vadd.f32 %v240, %v248
  %v264 = vadd.f32 %v241, %v248
  %v265 = vadd.f32 %v242, %v248
  %vm266 = vcmp.ge.f32.partialorder %v250, 0.0
  %vm267 = vcmp.ge.f32.partialorder %v251, 0.0
  %vm268 = vcmp.ge.f32.partialorder %v252, 0.0
  %vm269 = vcmp.ge.f32.partialorder %v253, 0.0
  %vm270 = vcmp.ge.f32.partialorder %v254, 0.0
  %vm271 = vcmp.ge.f32.partialorder %v255, 0.0
  %vm272 = vcmp.ge.f32.partialorder %v256, 0.0
  %vm273 = vcmp.ge.f32.partialorder %v257, 0.0
  %vm274 = vcmp.ge.f32.partialorder %v258, 0.0
  %vm275 = vcmp.ge.f32.partialorder %v259, 0.0
  %vm276 = vcmp.ge.f32.partialorder %v260, 0.0
  %vm277 = vcmp.ge.f32.partialorder %v261, 0.0
  %vm278 = vcmp.ge.f32.partialorder %v262, 0.0
  %vm279 = vcmp.ge.f32.partialorder %v263, 0.0
  %vm280 = vcmp.ge.f32.partialorder %v264, 0.0
  %vm281 = vcmp.ge.f32.partialorder %v265, 0.0
  %v282 = vmul.f32 %v250, 0.2
  %v283 = vmul.f32 %v251, 0.2
  %v284 = vmul.f32 %v252, 0.2
  %v285 = vmul.f32 %v253, 0.2
  %v286 = vmul.f32 %v254, 0.2
  %v287 = vmul.f32 %v255, 0.2
  %v288 = vmul.f32 %v256, 0.2
  %v289 = vmul.f32 %v257, 0.2
  %v290 = vmul.f32 %v258, 0.2
  %v291 = vmul.f32 %v259, 0.2
  %v292 = vmul.f32 %v260, 0.2
  %v293 = vmul.f32 %v261, 0.2
  %v294 = vmul.f32 %v262, 0.2
  %v295 = vmul.f32 %v263, 0.2
  %v296 = vmul.f32 %v264, 0.2
  %v297 = vmul.f32 %v265, 0.2
  %v298 = vsel %vm266, %v250, %v282
  %v299 = vsel %vm267, %v251, %v283
  %v300 = vsel %vm268, %v252, %v284
  %v301 = vsel %vm269, %v253, %v285
  %v302 = vsel %vm270, %v254, %v286
  %v303 = vsel %vm271, %v255, %v287
  %v304 = vsel %vm272, %v256, %v288
  %v305 = vsel %vm273, %v257, %v289
  %v306 = vsel %vm274, %v258, %v290
  %v307 = vsel %vm275, %v259, %v291
  %v308 = vsel %vm276, %v260, %v292
  %v309 = vsel %vm277, %v261, %v293
  %v310 = vsel %vm278, %v262, %v294
  %v311 = vsel %vm279, %v263, %v295
  %v312 = vsel %vm280, %v264, %v296
  %v313 = vsel %vm281, %v265, %v297
  %314 = vst [vmem:[%s4] sm:$0xff] %v298
  %315 = vst [vmem:[%s4 + $0x8] sm:$0xff] %v299
  %316 = vst [vmem:[%s4 + $0x10] sm:$0xff] %v300
  %317 = vst [vmem:[%s4 + $0x18] sm:$0xff] %v301
  %318 = vst [vmem:[%s4 + $0x20] sm:$0xff] %v302
  %319 = vst [vmem:[%s4 + $0x28] sm:$0xff] %v303
  %320 = vst [vmem:[%s4 + $0x30] sm:$0xff] %v304
  %321 = vst [vmem:[%s4 + $0x38] sm:$0xff] %v305
  %322 = vst [vmem:[%s4 + $0x40] sm:$0xff] %v306
  %323 = vst [vmem:[%s4 + $0x48] sm:$0xff] %v307
  %324 = vst [vmem:[%s4 + $0x50] sm:$0xff] %v308
  %325 = vst [vmem:[%s4 + $0x58] sm:$0xff] %v309
  %326 = vst [vmem:[%s4 + $0x60] sm:$0xff] %v310
  %327 = vst [vmem:[%s4 + $0x68] sm:$0xff] %v311
  %328 = vst [vmem:[%s4 + $0x70] sm:$0xff] %v312
  %329 = vst [vmem:[%s4 + $0x78] sm:$0xff] %v313
  // Predicated region
  $region18: #{downsample.3} parent=0 // pred_check
    _
  $region19: #{downsample.3} parent=0 // pred_check_branch
    %331 = sbr.rel (0) target = $region21
  $region20: #{downsample.3} parent=0 // pred_region
    _
  $region21: #{downsample.3} parent=0 // pred_fallthru
    _
  // Predicated region
  $region22: #{downsample.3} parent=0 // pred_check
    _
  $region23: #{downsample.3} parent=0 // pred_check_branch
    %333 = sbr.rel (0) target = $region25
  $region24: #{downsample.3} parent=0 // pred_region
    _
  $region25: #{downsample.3} parent=0 // pred_fallthru
    _

// kernel: downsample.2
$region0: #{downsample.2}
  #allocation0 [shape = 'u32[]', space=smem, size = 0x4, offset = 0x4, fixed_abs, tag = 'smem constant byte address 0x4 - core index']
  #allocation1 [shape = 'u32[144,128]{1,0:T(1,128)}', space=vmem, size = 0x12000, scoped, tag = 'internal scratch']
  %s0 = inlined_call_operand.vmem [shape: bf16[128,36], index: 0, kind: input, shape index: {}]
  %s1 = inlined_call_operand.vmem [shape: bf16[36,128], index: 1, kind: input, shape index: {}]
  %s2 = inlined_call_operand.vmem [shape: f32[1,128], index: 2, kind: output, shape index: {0}]
  %s3 = inlined_call_operand.vmem [shape: f32[1,128], index: 3, kind: output, shape index: {1}]
  %4 = xla_tuple %s2, %s3
  %s5 = sld [smem:[#allocation0]]
  $region30: #{downsample.2} parent=0
    _
  %s7 = ssub.s32 1, %s5
  %s8 = scalar_select 0, %s7, %s5
  // Predicated region
  $region2: #{downsample.2} parent=0 // pred_check
    _
  $region3: #{downsample.2} parent=0 // pred_check_branch
    %10 = sbr.rel (0) target = $region5
  $region4: #{downsample.2} parent=0 // pred_region
    _
  $region5: #{downsample.2} parent=0 // pred_fallthru
    _
  // Predicated region
  $region6: #{downsample.2} parent=0 // pred_check
    _
  $region7: #{downsample.2} parent=0 // pred_check_branch
    %12 = sbr.rel (0) target = $region9
  $region8: #{downsample.2} parent=0 // pred_region
    _
  $region9: #{downsample.2} parent=0 // pred_fallthru
    _
  %p14 = scmp.eq.s32.totalorder 0, 0
  // Predicated region
  $region10: #{downsample.2} parent=0 // pred_check
    %p15 = pneg %p14
  $region11: #{downsample.2} parent=0 // pred_check_branch
    %17 = sbr.rel (%p15) target = $region13
  $region12: #{downsample.2} parent=0 // pred_region
    %18 = vst [vmem:[%s2] sm:$0x1] 0.0
    %19 = vst [vmem:[%s3] sm:$0x1] 0.0
  $region13: #{downsample.2} parent=0 // pred_fallthru
    _
  %v20 = vld [vmem:[%s0] sm:$0xf]
  %v21 = vld [vmem:[%s0 + $0x4] sm:$0xf]
  %v22 = vld [vmem:[%s0 + $0x8] sm:$0xf]
  %v23 = vld [vmem:[%s0 + $0xc] sm:$0xf]
  %v24 = vld [vmem:[%s0 + $0x10] sm:$0xf]
  %v25 = vld [vmem:[%s0 + $0x14] sm:$0xf]
  %v26 = vld [vmem:[%s0 + $0x18] sm:$0xf]
  %v27 = vld [vmem:[%s0 + $0x1c] sm:$0xf]
  %v28 = vld [vmem:[%s0 + $0x20] sm:$0xf]
  %v29 = vld [vmem:[%s0 + $0x24] sm:$0xf]
  %v30 = vld [vmem:[%s0 + $0x28] sm:$0xf]
  %v31 = vld [vmem:[%s0 + $0x2c] sm:$0xf]
  %v32 = vld [vmem:[%s0 + $0x30] sm:$0xf]
  %v33 = vld [vmem:[%s0 + $0x34] sm:$0xf]
  %v34 = vld [vmem:[%s0 + $0x38] sm:$0xf]
  %v35 = vld [vmem:[%s0 + $0x3c] sm:$0xf]
  %v36 = vld [vmem:[%s1] sm:$0xf]
  %v37 = vld [vmem:[%s1 + $0x4] sm:$0xf]
  %v38 = vld [vmem:[%s1 + $0x8] sm:$0xf]
  %v39 = vld [vmem:[%s1 + $0xc] sm:$0xf]
  %v40 = vld [vmem:[%s1 + $0x10] sm:$0x3]
  %v57 = vunpack.c.l.b16 %v20
  %v58 = vunpack.c.l.b16 %v21
  %v59 = vunpack.c.l.b16 %v22
  %v60 = vunpack.c.l.b16 %v23
  %v61 = vunpack.c.l.b16 %v24
  %v62 = vunpack.c.l.b16 %v25
  %v63 = vunpack.c.l.b16 %v26
  %v64 = vunpack.c.l.b16 %v27
  %v65 = vunpack.c.l.b16 %v28
  %v66 = vunpack.c.l.b16 %v29
  %v67 = vunpack.c.l.b16 %v30
  %v68 = vunpack.c.l.b16 %v31
  %v69 = vunpack.c.l.b16 %v32
  %v70 = vunpack.c.l.b16 %v33
  %v71 = vunpack.c.l.b16 %v34
  %v72 = vunpack.c.l.b16 %v35
  %v73 = vpack.c.b16 %v58, %v57
  %v74 = vpack.c.b16 %v60, %v59
  %v75 = vpack.c.b16 %v62, %v61
  %v76 = vpack.c.b16 %v64, %v63
  %v77 = vpack.c.b16 %v66, %v65
  %v78 = vpack.c.b16 %v68, %v67
  %v79 = vpack.c.b16 %v70, %v69
  %v80 = vpack.c.b16 %v72, %v71
  %v86 = vunpack.c.l.b16 %v36
  %v87 = vunpack.c.l.b16 %v37
  %v88 = vunpack.c.l.b16 %v38
  %v89 = vunpack.c.l.b16 %v39
  %v90 = vunpack.c.l.b16 %v40
  %v91 = vpack.c.b16 %v87, %v86
  %v92 = vpack.c.b16 %v89, %v88
  %v93 = vpack.c.b16 %v90, %v90
  %vm96 = vcmask 293888
  %v98 = vsel %vm96, %v73, 0
  %v101 = vsel %vm96, %v74, 0
  %v104 = vsel %vm96, %v75, 0
  %v107 = vsel %vm96, %v76, 0
  %v110 = vsel %vm96, %v77, 0
  %v113 = vsel %vm96, %v78, 0
  %v116 = vsel %vm96, %v79, 0
  %v119 = vsel %vm96, %v80, 0
  %vm121 = vcmask 1041408
  %v123 = vsel %vm121, %v93, 0
  %125 = vmatprep.subr.bf16.mxu0 0
  %126 = vmatpush1.bf16.msra.mxu0 %v91
  %127 = vmatprep.subr.bf16.mxu0 0
  %128 = vmatpush1.bf16.msra.mxu0 %v92
  %129 = vmatprep.subr.bf16.mxu0 0
  %130 = vmatpush1.bf16.msra.mxu0 %v123
  %131 = vmatprep.subr.bf16.mxu0 0
  %132 = vmatpush1.bf16.msra.mxu0 0
  %133 = vmatprep.subr.bf16.mxu0 0
  %134 = vmatpush1.bf16.msra.mxu0 0
  %135 = vmatprep.subr.bf16.mxu0 0
  %136 = vmatpush1.bf16.msra.mxu0 0
  %137 = vmatprep.subr.bf16.mxu0 0
  %138 = vmatpush1.bf16.msra.mxu0 0
  %139 = vmatprep.subr.bf16.mxu0 0
  %140 = vmatpush1.bf16.msra.mxu0 0
  %141 = vmatprep.subr.bf16.mxu0 0
  %142 = vmatpush1.bf16.msra.mxu0 0
  %143 = vmatprep.subr.bf16.mxu0 0
  %144 = vmatpush1.bf16.msra.mxu0 0
  %145 = vmatprep.subr.bf16.mxu0 0
  %146 = vmatpush1.bf16.msra.mxu0 0
  %147 = vmatprep.subr.bf16.mxu0 0
  %148 = vmatpush1.bf16.msra.mxu0 0
  %149 = vmatprep.subr.bf16.mxu0 0
  %150 = vmatpush1.bf16.msra.mxu0 0
  %151 = vmatprep.subr.bf16.mxu0 0
  %152 = vmatpush1.bf16.msra.mxu0 0
  %153 = vmatprep.subr.bf16.mxu0 0
  %154 = vmatpush1.bf16.msra.mxu0 0
  %155 = vmatprep.subr.bf16.mxu0 0
  %156 = vmatpush1.bf16.msra.mxu0 0
  %157 = vmatprep.mubr.bf16.mxu0 0
  %158 = vmatmul.mubr.bf16.gmra.mrb[0].mxu0 %v98
  %v159 = vpop.f32.mrb[0].mxu0
  %v160 = vadd.f32 0.0, %v159
  %v161 = vpop.f32.mrb[0].mxu0
  %v162 = vpop.f32.mrb[0].mxu0
  %v163 = vadd.f32 0.0, %v162
  %v164 = vpop.f32.mrb[0].mxu0
  %165 = vmatprep.mubr.bf16.mxu0 0
  %166 = vmatmul.mubr.bf16.gmra.mrb[0].mxu0 %v101
  %v167 = vpop.f32.mrb[0].mxu0
  %v168 = vadd.f32 0.0, %v167
  %v169 = vpop.f32.mrb[0].mxu0
  %v170 = vpop.f32.mrb[0].mxu0
  %v171 = vadd.f32 0.0, %v170
  %v172 = vpop.f32.mrb[0].mxu0
  %173 = vmatprep.mubr.bf16.mxu0 0
  %174 = vmatmul.mubr.bf16.gmra.mrb[0].mxu0 %v104
  %v175 = vpop.f32.mrb[0].mxu0
  %v176 = vadd.f32 0.0, %v175
  %v177 = vpop.f32.mrb[0].mxu0
  %v178 = vpop.f32.mrb[0].mxu0
  %v179 = vadd.f32 0.0, %v178
  %v180 = vpop.f32.mrb[0].mxu0
  %181 = vmatprep.mubr.bf16.mxu0 0
  %182 = vmatmul.mubr.bf16.gmra.mrb[0].mxu0 %v107
  %v183 = vpop.f32.mrb[0].mxu0
  %v184 = vadd.f32 0.0, %v183
  %v185 = vpop.f32.mrb[0].mxu0
  %v186 = vpop.f32.mrb[0].mxu0
  %v187 = vadd.f32 0.0, %v186
  %v188 = vpop.f32.mrb[0].mxu0
  %189 = vmatprep.mubr.bf16.mxu0 0
  %190 = vmatmul.mubr.bf16.gmra.mrb[0].mxu0 %v110
  %v191 = vpop.f32.mrb[0].mxu0
  %v192 = vadd.f32 0.0, %v191
  %v193 = vpop.f32.mrb[0].mxu0
  %v194 = vpop.f32.mrb[0].mxu0
  %v195 = vadd.f32 0.0, %v194
  %v196 = vpop.f32.mrb[0].mxu0
  %197 = vmatprep.mubr.bf16.mxu0 0
  %198 = vmatmul.mubr.bf16.gmra.mrb[0].mxu0 %v113
  %v199 = vpop.f32.mrb[0].mxu0
  %v200 = vadd.f32 0.0, %v199
  %v201 = vpop.f32.mrb[0].mxu0
  %v202 = vpop.f32.mrb[0].mxu0
  %v203 = vadd.f32 0.0, %v202
  %v204 = vpop.f32.mrb[0].mxu0
  %205 = vmatprep.mubr.bf16.mxu0 0
  %206 = vmatmul.mubr.bf16.gmra.mrb[0].mxu0 %v116
  %v207 = vpop.f32.mrb[0].mxu0
  %v208 = vadd.f32 0.0, %v207
  %v209 = vpop.f32.mrb[0].mxu0
  %v210 = vpop.f32.mrb[0].mxu0
  %v211 = vadd.f32 0.0, %v210
  %v212 = vpop.f32.mrb[0].mxu0
  %213 = vmatprep.mubr.bf16.mxu0 0
  %214 = vmatmul.mubr.bf16.gmra.mrb[0].mxu0 %v119
  %v215 = vpop.f32.mrb[0].mxu0
  %v216 = vadd.f32 0.0, %v215
  %v217 = vpop.f32.mrb[0].mxu0
  %v218 = vpop.f32.mrb[0].mxu0
  %v219 = vadd.f32 0.0, %v218
  %v220 = vpop.f32.mrb[0].mxu0
  %221 = vdwg.mxu0
  %v222 = vld [vmem:[%s2] sm:$0x1]
  %v223 = vadd.f32 %v160, %v163
  %v224 = vadd.f32 %v223, %v168
  %v225 = vadd.f32 %v224, %v171
  %v226 = vadd.f32 %v225, %v176
  %v227 = vadd.f32 %v226, %v179
  %v228 = vadd.f32 %v227, %v184
  %v229 = vadd.f32 %v228, %v187
  %v230 = vadd.f32 %v229, %v192
  %v231 = vadd.f32 %v230, %v195
  %v232 = vadd.f32 %v231, %v200
  %v233 = vadd.f32 %v232, %v203
  %v234 = vadd.f32 %v233, %v208
  %v235 = vadd.f32 %v234, %v211
  %v236 = vadd.f32 %v235, %v216
  %v237 = vadd.f32 %v236, %v219
  %v238 = vrot.slane %v237, 4
  %v239 = vadd.f32 %v237, %v238
  %v240 = vrot.slane %v239, 2
  %v241 = vadd.f32 %v239, %v240
  %v242 = vrot.slane %v241, 1
  %v243 = vadd.f32 %v241, %v242
  %v244 = vadd.f32 %v222, %v243
  %245 = vst [vmem:[%s2] sm:$0x1] %v244
  %v246 = vld [vmem:[%s3] sm:$0x1]
  %v247 = vmul.f32 %v160, %v160
  %v248 = vmul.f32 %v163, %v163
  %v249 = vmul.f32 %v168, %v168
  %v250 = vmul.f32 %v171, %v171
  %v251 = vmul.f32 %v176, %v176
  %v252 = vmul.f32 %v179, %v179
  %v253 = vmul.f32 %v184, %v184
  %v254 = vmul.f32 %v187, %v187
  %v255 = vmul.f32 %v192, %v192
  %v256 = vmul.f32 %v195, %v195
  %v257 = vmul.f32 %v200, %v200
  %v258 = vmul.f32 %v203, %v203
  %v259 = vmul.f32 %v208, %v208
  %v260 = vmul.f32 %v211, %v211
  %v261 = vmul.f32 %v216, %v216
  %v262 = vmul.f32 %v219, %v219
  %v263 = vadd.f32 %v247, %v248
  %v264 = vadd.f32 %v263, %v249
  %v265 = vadd.f32 %v264, %v250
  %v266 = vadd.f32 %v265, %v251
  %v267 = vadd.f32 %v266, %v252
  %v268 = vadd.f32 %v267, %v253
  %v269 = vadd.f32 %v268, %v254
  %v270 = vadd.f32 %v269, %v255
  %v271 = vadd.f32 %v270, %v256
  %v272 = vadd.f32 %v271, %v257
  %v273 = vadd.f32 %v272, %v258
  %v274 = vadd.f32 %v273, %v259
  %v275 = vadd.f32 %v274, %v260
  %v276 = vadd.f32 %v275, %v261
  %v277 = vadd.f32 %v276, %v262
  %v278 = vrot.slane %v277, 4
  %v279 = vadd.f32 %v277, %v278
  %v280 = vrot.slane %v279, 2
  %v281 = vadd.f32 %v279, %v280
  %v282 = vrot.slane %v281, 1
  %v283 = vadd.f32 %v281, %v282
  %v284 = vadd.f32 %v246, %v283
  %285 = vst [vmem:[%s3] sm:$0x1] %v284
  // Predicated region
  $region14: #{downsample.2} parent=0 // pred_check
    _
  $region15: #{downsample.2} parent=0 // pred_check_branch
    %287 = sbr.rel (0) target = $region17
  $region16: #{downsample.2} parent=0 // pred_region
    _
  $region17: #{downsample.2} parent=0 // pred_fallthru
    _
  // Predicated region
  $region18: #{downsample.2} parent=0 // pred_check
    _
  $region19: #{downsample.2} parent=0 // pred_check_branch
    %289 = sbr.rel (0) target = $region21
  $region20: #{downsample.2} parent=0 // pred_region
    _
  $region21: #{downsample.2} parent=0 // pred_fallthru
    _
  // Predicated region
  $region22: #{downsample.2} parent=0 // pred_check
    _
  $region23: #{downsample.2} parent=0 // pred_check_branch
    %291 = sbr.rel (0) target = $region25
  $region24: #{downsample.2} parent=0 // pred_region
    _
  $region25: #{downsample.2} parent=0 // pred_fallthru
    _
  // Predicated region
  $region26: #{downsample.2} parent=0 // pred_check
    _
  $region27: #{downsample.2} parent=0 // pred_check_branch
    %293 = sbr.rel (0) target = $region29
  $region28: #{downsample.2} parent=0 // pred_region
    _
  $region29: #{downsample.2} parent=0 // pred_fallthru
    _

</llo_original>
